<compile_context>
chip_gen: v6e
topology: v6e:2x2x1
jax: 0.10.0
libtpu: 0.0.40
codegen_flags: <defaults>
</compile_context>

<pallas_src>
import functools

import jax
import jax.numpy as jnp
from jax.experimental import pallas as pl
from jax.experimental.pallas import tpu as pltpu


def _conv_bias_kernel(x_ref, w_ref, b_ref, o_ref, xpad_ref, *,
                      k, s, p, Wp, Lout, Ho, Wo, fold_all):
    """Fused Conv2d(+bias) for one batch image.

    x_ref   : (1, Cin, H, W)   unpadded input image (straight from HBM)
    w_ref   : (Cout, k*k*Cin)  folded weight          [fold_all]
              (k, Cout, k*Cin) kw-folded weight       [otherwise]
    b_ref   : (Cout, 1)        f32 bias (resident)
    o_ref   : (1, Cout, Ho*Wo) compact output         [stride == 1]
              (1, Cout, Lout)  wide (Ho1*Wp) output   [stride  > 1]
    xpad_ref: (Cin, Lp)        VMEM scratch: flat, spatially padded image
                               (zero border + one zero guard row at the bottom)
    """
    Cin, H, W = x_ref.shape[1], x_ref.shape[2], x_ref.shape[3]
    Cout = o_ref.shape[1]

    # ---- padding folded into the kernel: zero the scratch, write the interior ----
    xpad_ref[...] = jnp.zeros_like(xpad_ref)
    for h in range(H):                                  # static trip count
        rstart = (h + p) * Wp + p
        xpad_ref[:, rstart:rstart + W] = x_ref[0, :, h, :]

    def tap(kh, kw):
        off = kh * Wp + kw                              # static lane offset of this tap
        return xpad_ref[:, off:off + Lout]              # (Cin, Lout) fresh ref load

    bias = b_ref[...]                                   # (Cout, 1) f32

    # ---- k*k taps folded into the MXU contraction ----
    if fold_all:
        patches = jnp.concatenate(
            [tap(kh, kw) for kh in range(k) for kw in range(k)], axis=0)  # (k*k*Cin, Lout)
        acc = jnp.dot(w_ref[...], patches,
                      preferred_element_type=jnp.float32) + bias
    else:
        # kw-only fold (VMEM gate for huge Cin*Lout on v7x): k dots of depth k*Cin.
        acc = jnp.broadcast_to(bias, (Cout, Lout)).astype(jnp.float32)
        for kh in range(k):
            band = jnp.concatenate([tap(kh, kw) for kw in range(k)], axis=0)  # (k*Cin, Lout)
            acc = acc + jnp.dot(w_ref[kh], band, preferred_element_type=jnp.float32)

    if s == 1:
        # Compact the Wp-Wo wrap-around junk columns away BEFORE the store so the
        # HBM store is dense (and the wrapper needs no slice copy).
        out = jnp.concatenate([acc[:, ho * Wp: ho * Wp + Wo] for ho in range(Ho)],
                              axis=1)                   # (Cout, Ho*Wo)
        o_ref[0] = out.astype(o_ref.dtype)
    else:
        # TODO(synk): true strided kernel (phase-decomposed taps); for stride>1 the
        # stride-1 wide result is stored and subsampled in the wrapper (s^2 overcompute).
        o_ref[0] = acc.astype(o_ref.dtype)


def _vmem_budget_bytes():
    """~3/4 of this generation's physical VMEM (128 MiB v5e/v6e, 64 MiB v7x)."""
    cap = 64 << 20
    try:
        cap = int(getattr(pltpu.get_tpu_info(), "vmem_capacity_bytes", cap)) or cap
    except Exception:
        pass
    return (cap * 3) // 4


@functools.partial(jax.jit, static_argnames=("kernel", "stride", "padding"))
def conv_bias_forward(x, weight, bias, *, kernel, stride, padding):
    """x: (N, Cin, H, W) NCHW; weight: (Cout, Cin, k, k); bias: (Cout,). Returns NCHW."""
    N, Cin, H, W = x.shape
    Cout = weight.shape[0]
    k, s, p = kernel, stride, padding

    Hp, Wp = H + 2 * p, W + 2 * p
    Ho1, Wo1 = Hp - k + 1, Wp - k + 1            # stride-1 output extents
    Ho, Wo = (Hp - k) // s + 1, (Wp - k) // s + 1
    Lp = (Hp + 1) * Wp                           # +1 zero guard row keeps every tap slice in-bounds
    Lout = Ho1 * Wp                              # "wide" (padded-width) stride-1 output length

    itemsize = x.dtype.itemsize
    budget = _vmem_budget_bytes()

    # Fold all k*k taps into one contraction if the patch stack fits comfortably,
    # otherwise fold only kw (k dots of depth k*Cin).
    fold_all = (k * k * Cin * Lout * itemsize) <= budget // 4

    weight = weight.astype(x.dtype)
    if fold_all:
        # w[co, (kh*k + kw)*Cin + cin] -- permute the tiny weight, not the activations.
        w_in = jnp.transpose(weight, (0, 2, 3, 1)).reshape(Cout, k * k * Cin)
        w_spec = pl.BlockSpec((Cout, k * k * Cin), lambda n: (0, 0))
    else:
        # w[kh, co, kw*Cin + cin]
        w_in = jnp.transpose(weight, (2, 0, 3, 1)).reshape(k, Cout, k * Cin)
        w_spec = pl.BlockSpec((k, Cout, k * Cin), lambda n: (0, 0, 0))
    b_in = bias.astype(jnp.float32).reshape(Cout, 1)

    out_cols = Ho * Wo if s == 1 else Lout

    # VMEM estimate: double-buffered in/out blocks, padded scratch, tap stack,
    # f32 accumulator + compaction temporaries, resident weights/bias, headroom.
    patch_bytes = (k * k if fold_all else k) * Cin * Lout * itemsize
    vmem_est = (2 * Cin * H * W * itemsize
                + Cin * Lp * itemsize
                + patch_bytes
                + 3 * Cout * Lout * 4
                + 2 * Cout * out_cols * itemsize
                + 2 * w_in.size * itemsize
                + 2 * Cout * 4
                + (4 << 20))
    # TODO(synk): if vmem_est exceeds `budget` (huge Cin*H*W on v7x), add a spatial
    # row-block grid axis with a (k-1)-row halo instead of clamping.
    vmem_limit = int(min(budget, max(32 << 20, vmem_est)))

    kern = functools.partial(_conv_bias_kernel, k=k, s=s, p=p, Wp=Wp,
                             Lout=Lout, Ho=Ho, Wo=Wo, fold_all=fold_all)

    out_flat = pl.pallas_call(
        kern,
        out_shape=jax.ShapeDtypeStruct((N, Cout, out_cols), x.dtype),
        grid=(N,),
        in_specs=[
            pl.BlockSpec((1, Cin, H, W), lambda n: (n, 0, 0, 0)),   # one unpadded image / step
            w_spec,                                                 # weights resident
            pl.BlockSpec((Cout, 1), lambda n: (0, 0)),              # bias resident
        ],
        out_specs=pl.BlockSpec((1, Cout, out_cols), lambda n: (n, 0, 0)),
        scratch_shapes=[pltpu.VMEM((Cin, Lp), x.dtype)],
        compiler_params=pltpu.CompilerParams(
            dimension_semantics=("parallel",),
            vmem_limit_bytes=vmem_limit,
        ),
    )(x, w_in, b_in)

    if s == 1:
        # (N, Cout, Ho*Wo) is already compact & contiguous -> free metadata reshape.
        return out_flat.reshape(N, Cout, Ho, Wo)
    # stride > 1: drop wrap columns and subsample the stride-1 wide result.
    wide = out_flat.reshape(N, Cout, Ho1, Wp)
    return wide[:, :, ::s, ::s][:, :, :Ho, :Wo]


def init_conv_bias_params(key, inp, oup, kernel, dtype=jnp.float32):
    # Deterministic init mimicking PyTorch Conv2d defaults (kaiming-uniform-ish).
    kw_key, kb_key = jax.random.split(key)
    fan_in = inp * kernel * kernel
    bound = 1.0 / jnp.sqrt(fan_in)
    weight = jax.random.uniform(kw_key, (oup, inp, kernel, kernel),
                                dtype=dtype, minval=-bound, maxval=bound)
    bias = jax.random.uniform(kb_key, (oup,), dtype=dtype,
                              minval=-bound, maxval=bound)
    return weight, bias


def _reference(x, weight, bias, stride, padding):
    return jax.lax.conv_general_dilated(
        x, weight, window_strides=(stride, stride),
        padding=[(padding, padding), (padding, padding)],
        dimension_numbers=("NCHW", "OIHW", "NCHW")) + bias[None, :, None, None]


if __name__ == "__main__":
    # Module config: conv_bias(inp=4, oup=8, kernel=3, stride=1, padding=1)
    inp, oup, kernel, stride, padding = 4, 8, 3, 1, 1
    N, H, W = 2, 16, 16

    key = jax.random.PRNGKey(0)
    kx, kp = jax.random.split(key)
    x = jax.random.normal(kx, (N, inp, H, W), dtype=jnp.float32)
    weight, bias = init_conv_bias_params(kp, inp, oup, kernel)

    out = conv_bias_forward(x, weight, bias,
                            kernel=kernel, stride=stride, padding=padding)
    out = jax.block_until_ready(out)
    ref = _reference(x, weight, bias, stride, padding)
    assert out.shape == (N, oup, H, W), out.shape
    assert jnp.allclose(out, ref, atol=1e-4, rtol=1e-4)

    # Also exercise the stride>1 (wide-output) path of the same kernel.
    out2 = conv_bias_forward(x, weight, bias, kernel=kernel, stride=2, padding=padding)
    out2 = jax.block_until_ready(out2)
    ref2 = _reference(x, weight, bias, 2, padding)
    assert out2.shape == ref2.shape, (out2.shape, ref2.shape)
    assert jnp.allclose(out2, ref2, atol=1e-4, rtol=1e-4)

    print("KERNEL_OK")
</pallas_src>

<mosaic_0001>
module attributes {stable_mosaic.version = 11 : i64} {
  func.func @_conv_bias_kernel(%arg0: i32, %arg1: memref<1x4x16x16xf32, #tpu.memory_space<vmem>>, %arg2: memref<8x36xf32, #tpu.memory_space<vmem>>, %arg3: memref<8x1xf32, #tpu.memory_space<vmem>>, %arg4: memref<1x8x256xf32, #tpu.memory_space<vmem>>, %arg5: memref<4x342xf32, #tpu.memory_space<vmem>>) attributes {dimension_semantics = [#tpu.dimension_semantics<parallel>], iteration_bounds = array<i64: 2>, scalar_prefetch = 0 : i64, scratch_operands = 1 : i64, tpu.core_type = #tpu.core_type<tc>, window_params = [{transform_indices = @transform_0, window_bounds = array<i64: 1, 4, 16, 16>}, {pipeline_mode = #tpu.pipeline_mode<synchronous>, transform_indices = @transform_1, window_bounds = array<i64: 8, 36>}, {pipeline_mode = #tpu.pipeline_mode<synchronous>, transform_indices = @transform_2, window_bounds = array<i64: 8, 1>}, {transform_indices = @transform_3, window_bounds = array<i64: 1, 8, 256>}]} {
    %cst = arith.constant 0.000000e+00 : f32
    %0 = vector.broadcast %cst : f32 to vector<4x342xf32>
    %c0 = arith.constant 0 : index
    %c0_0 = arith.constant 0 : index
    %1 = vector.load %arg5[%c0, %c0_0] : memref<4x342xf32, #tpu.memory_space<vmem>>, vector<4x342xf32>
    tpu.vector_store %arg5[%c0, %c0_0], %0 {strides = array<i32>} : memref<4x342xf32, #tpu.memory_space<vmem>>, vector<4x342xf32>,
    %c0_1 = arith.constant 0 : index
    %c0_2 = arith.constant 0 : index
    %c0_3 = arith.constant 0 : index
    %c0_4 = arith.constant 0 : index
    %2 = vector.load %arg1[%c0_1, %c0_2, %c0_3, %c0_4] : memref<1x4x16x16xf32, #tpu.memory_space<vmem>>, vector<1x4x1x16xf32>
    %3 = vector.shape_cast %2 : vector<1x4x1x16xf32> to vector<4x16xf32>
    %c0_5 = arith.constant 0 : index
    %c19 = arith.constant 19 : index
    %4 = vector.load %arg5[%c0_5, %c19] : memref<4x342xf32, #tpu.memory_space<vmem>>, vector<4x16xf32>
    tpu.vector_store %arg5[%c0_5, %c19], %3 {strides = array<i32>} : memref<4x342xf32, #tpu.memory_space<vmem>>, vector<4x16xf32>,
    %c0_6 = arith.constant 0 : index
    %c0_7 = arith.constant 0 : index
    %c1 = arith.constant 1 : index
    %c0_8 = arith.constant 0 : index
    %5 = vector.load %arg1[%c0_6, %c0_7, %c1, %c0_8] : memref<1x4x16x16xf32, #tpu.memory_space<vmem>>, vector<1x4x1x16xf32>
    %6 = vector.shape_cast %5 : vector<1x4x1x16xf32> to vector<4x16xf32>
    %c0_9 = arith.constant 0 : index
    %c37 = arith.constant 37 : index
    %7 = vector.load %arg5[%c0_9, %c37] : memref<4x342xf32, #tpu.memory_space<vmem>>, vector<4x16xf32>
    tpu.vector_store %arg5[%c0_9, %c37], %6 {strides = array<i32>} : memref<4x342xf32, #tpu.memory_space<vmem>>, vector<4x16xf32>,
    %c0_10 = arith.constant 0 : index
    %c0_11 = arith.constant 0 : index
    %c2 = arith.constant 2 : index
    %c0_12 = arith.constant 0 : index
    %8 = vector.load %arg1[%c0_10, %c0_11, %c2, %c0_12] : memref<1x4x16x16xf32, #tpu.memory_space<vmem>>, vector<1x4x1x16xf32>
    %9 = vector.shape_cast %8 : vector<1x4x1x16xf32> to vector<4x16xf32>
    %c0_13 = arith.constant 0 : index
    %c55 = arith.constant 55 : index
    %10 = vector.load %arg5[%c0_13, %c55] : memref<4x342xf32, #tpu.memory_space<vmem>>, vector<4x16xf32>
    tpu.vector_store %arg5[%c0_13, %c55], %9 {strides = array<i32>} : memref<4x342xf32, #tpu.memory_space<vmem>>, vector<4x16xf32>,
    %c0_14 = arith.constant 0 : index
    %c0_15 = arith.constant 0 : index
    %c3 = arith.constant 3 : index
    %c0_16 = arith.constant 0 : index
    %11 = vector.load %arg1[%c0_14, %c0_15, %c3, %c0_16] : memref<1x4x16x16xf32, #tpu.memory_space<vmem>>, vector<1x4x1x16xf32>
    %12 = vector.shape_cast %11 : vector<1x4x1x16xf32> to vector<4x16xf32>
    %c0_17 = arith.constant 0 : index
    %c73 = arith.constant 73 : index
    %13 = vector.load %arg5[%c0_17, %c73] : memref<4x342xf32, #tpu.memory_space<vmem>>, vector<4x16xf32>
    tpu.vector_store %arg5[%c0_17, %c73], %12 {strides = array<i32>} : memref<4x342xf32, #tpu.memory_space<vmem>>, vector<4x16xf32>,
    %c0_18 = arith.constant 0 : index
    %c0_19 = arith.constant 0 : index
    %c4 = arith.constant 4 : index
    %c0_20 = arith.constant 0 : index
    %14 = vector.load %arg1[%c0_18, %c0_19, %c4, %c0_20] : memref<1x4x16x16xf32, #tpu.memory_space<vmem>>, vector<1x4x1x16xf32>
    %15 = vector.shape_cast %14 : vector<1x4x1x16xf32> to vector<4x16xf32>
    %c0_21 = arith.constant 0 : index
    %c91 = arith.constant 91 : index
    %16 = vector.load %arg5[%c0_21, %c91] : memref<4x342xf32, #tpu.memory_space<vmem>>, vector<4x16xf32>
    tpu.vector_store %arg5[%c0_21, %c91], %15 {strides = array<i32>} : memref<4x342xf32, #tpu.memory_space<vmem>>, vector<4x16xf32>,
    %c0_22 = arith.constant 0 : index
    %c0_23 = arith.constant 0 : index
    %c5 = arith.constant 5 : index
    %c0_24 = arith.constant 0 : index
    %17 = vector.load %arg1[%c0_22, %c0_23, %c5, %c0_24] : memref<1x4x16x16xf32, #tpu.memory_space<vmem>>, vector<1x4x1x16xf32>
    %18 = vector.shape_cast %17 : vector<1x4x1x16xf32> to vector<4x16xf32>
    %c0_25 = arith.constant 0 : index
    %c109 = arith.constant 109 : index
    %19 = vector.load %arg5[%c0_25, %c109] : memref<4x342xf32, #tpu.memory_space<vmem>>, vector<4x16xf32>
    tpu.vector_store %arg5[%c0_25, %c109], %18 {strides = array<i32>} : memref<4x342xf32, #tpu.memory_space<vmem>>, vector<4x16xf32>,
    %c0_26 = arith.constant 0 : index
    %c0_27 = arith.constant 0 : index
    %c6 = arith.constant 6 : index
    %c0_28 = arith.constant 0 : index
    %20 = vector.load %arg1[%c0_26, %c0_27, %c6, %c0_28] : memref<1x4x16x16xf32, #tpu.memory_space<vmem>>, vector<1x4x1x16xf32>
    %21 = vector.shape_cast %20 : vector<1x4x1x16xf32> to vector<4x16xf32>
    %c0_29 = arith.constant 0 : index
    %c127 = arith.constant 127 : index
    %22 = vector.load %arg5[%c0_29, %c127] : memref<4x342xf32, #tpu.memory_space<vmem>>, vector<4x16xf32>
    tpu.vector_store %arg5[%c0_29, %c127], %21 {strides = array<i32>} : memref<4x342xf32, #tpu.memory_space<vmem>>, vector<4x16xf32>,
    %c0_30 = arith.constant 0 : index
    %c0_31 = arith.constant 0 : index
    %c7 = arith.constant 7 : index
    %c0_32 = arith.constant 0 : index
    %23 = vector.load %arg1[%c0_30, %c0_31, %c7, %c0_32] : memref<1x4x16x16xf32, #tpu.memory_space<vmem>>, vector<1x4x1x16xf32>
    %24 = vector.shape_cast %23 : vector<1x4x1x16xf32> to vector<4x16xf32>
    %c0_33 = arith.constant 0 : index
    %c145 = arith.constant 145 : index
    %25 = vector.load %arg5[%c0_33, %c145] : memref<4x342xf32, #tpu.memory_space<vmem>>, vector<4x16xf32>
    tpu.vector_store %arg5[%c0_33, %c145], %24 {strides = array<i32>} : memref<4x342xf32, #tpu.memory_space<vmem>>, vector<4x16xf32>,
    %c0_34 = arith.constant 0 : index
    %c0_35 = arith.constant 0 : index
    %c8 = arith.constant 8 : index
    %c0_36 = arith.constant 0 : index
    %26 = vector.load %arg1[%c0_34, %c0_35, %c8, %c0_36] : memref<1x4x16x16xf32, #tpu.memory_space<vmem>>, vector<1x4x1x16xf32>
    %27 = vector.shape_cast %26 : vector<1x4x1x16xf32> to vector<4x16xf32>
    %c0_37 = arith.constant 0 : index
    %c163 = arith.constant 163 : index
    %28 = vector.load %arg5[%c0_37, %c163] : memref<4x342xf32, #tpu.memory_space<vmem>>, vector<4x16xf32>
    tpu.vector_store %arg5[%c0_37, %c163], %27 {strides = array<i32>} : memref<4x342xf32, #tpu.memory_space<vmem>>, vector<4x16xf32>,
    %c0_38 = arith.constant 0 : index
    %c0_39 = arith.constant 0 : index
    %c9 = arith.constant 9 : index
    %c0_40 = arith.constant 0 : index
    %29 = vector.load %arg1[%c0_38, %c0_39, %c9, %c0_40] : memref<1x4x16x16xf32, #tpu.memory_space<vmem>>, vector<1x4x1x16xf32>
    %30 = vector.shape_cast %29 : vector<1x4x1x16xf32> to vector<4x16xf32>
    %c0_41 = arith.constant 0 : index
    %c181 = arith.constant 181 : index
    %31 = vector.load %arg5[%c0_41, %c181] : memref<4x342xf32, #tpu.memory_space<vmem>>, vector<4x16xf32>
    tpu.vector_store %arg5[%c0_41, %c181], %30 {strides = array<i32>} : memref<4x342xf32, #tpu.memory_space<vmem>>, vector<4x16xf32>,
    %c0_42 = arith.constant 0 : index
    %c0_43 = arith.constant 0 : index
    %c10 = arith.constant 10 : index
    %c0_44 = arith.constant 0 : index
    %32 = vector.load %arg1[%c0_42, %c0_43, %c10, %c0_44] : memref<1x4x16x16xf32, #tpu.memory_space<vmem>>, vector<1x4x1x16xf32>
    %33 = vector.shape_cast %32 : vector<1x4x1x16xf32> to vector<4x16xf32>
    %c0_45 = arith.constant 0 : index
    %c199 = arith.constant 199 : index
    %34 = vector.load %arg5[%c0_45, %c199] : memref<4x342xf32, #tpu.memory_space<vmem>>, vector<4x16xf32>
    tpu.vector_store %arg5[%c0_45, %c199], %33 {strides = array<i32>} : memref<4x342xf32, #tpu.memory_space<vmem>>, vector<4x16xf32>,
    %c0_46 = arith.constant 0 : index
    %c0_47 = arith.constant 0 : index
    %c11 = arith.constant 11 : index
    %c0_48 = arith.constant 0 : index
    %35 = vector.load %arg1[%c0_46, %c0_47, %c11, %c0_48] : memref<1x4x16x16xf32, #tpu.memory_space<vmem>>, vector<1x4x1x16xf32>
    %36 = vector.shape_cast %35 : vector<1x4x1x16xf32> to vector<4x16xf32>
    %c0_49 = arith.constant 0 : index
    %c217 = arith.constant 217 : index
    %37 = vector.load %arg5[%c0_49, %c217] : memref<4x342xf32, #tpu.memory_space<vmem>>, vector<4x16xf32>
    tpu.vector_store %arg5[%c0_49, %c217], %36 {strides = array<i32>} : memref<4x342xf32, #tpu.memory_space<vmem>>, vector<4x16xf32>,
    %c0_50 = arith.constant 0 : index
    %c0_51 = arith.constant 0 : index
    %c12 = arith.constant 12 : index
    %c0_52 = arith.constant 0 : index
    %38 = vector.load %arg1[%c0_50, %c0_51, %c12, %c0_52] : memref<1x4x16x16xf32, #tpu.memory_space<vmem>>, vector<1x4x1x16xf32>
    %39 = vector.shape_cast %38 : vector<1x4x1x16xf32> to vector<4x16xf32>
    %c0_53 = arith.constant 0 : index
    %c235 = arith.constant 235 : index
    %40 = vector.load %arg5[%c0_53, %c235] : memref<4x342xf32, #tpu.memory_space<vmem>>, vector<4x16xf32>
    tpu.vector_store %arg5[%c0_53, %c235], %39 {strides = array<i32>} : memref<4x342xf32, #tpu.memory_space<vmem>>, vector<4x16xf32>,
    %c0_54 = arith.constant 0 : index
    %c0_55 = arith.constant 0 : index
    %c13 = arith.constant 13 : index
    %c0_56 = arith.constant 0 : index
    %41 = vector.load %arg1[%c0_54, %c0_55, %c13, %c0_56] : memref<1x4x16x16xf32, #tpu.memory_space<vmem>>, vector<1x4x1x16xf32>
    %42 = vector.shape_cast %41 : vector<1x4x1x16xf32> to vector<4x16xf32>
    %c0_57 = arith.constant 0 : index
    %c253 = arith.constant 253 : index
    %43 = vector.load %arg5[%c0_57, %c253] : memref<4x342xf32, #tpu.memory_space<vmem>>, vector<4x16xf32>
    tpu.vector_store %arg5[%c0_57, %c253], %42 {strides = array<i32>} : memref<4x342xf32, #tpu.memory_space<vmem>>, vector<4x16xf32>,
    %c0_58 = arith.constant 0 : index
    %c0_59 = arith.constant 0 : index
    %c14 = arith.constant 14 : index
    %c0_60 = arith.constant 0 : index
    %44 = vector.load %arg1[%c0_58, %c0_59, %c14, %c0_60] : memref<1x4x16x16xf32, #tpu.memory_space<vmem>>, vector<1x4x1x16xf32>
    %45 = vector.shape_cast %44 : vector<1x4x1x16xf32> to vector<4x16xf32>
    %c0_61 = arith.constant 0 : index
    %c271 = arith.constant 271 : index
    %46 = vector.load %arg5[%c0_61, %c271] : memref<4x342xf32, #tpu.memory_space<vmem>>, vector<4x16xf32>
    tpu.vector_store %arg5[%c0_61, %c271], %45 {strides = array<i32>} : memref<4x342xf32, #tpu.memory_space<vmem>>, vector<4x16xf32>,
    %c0_62 = arith.constant 0 : index
    %c0_63 = arith.constant 0 : index
    %c15 = arith.constant 15 : index
    %c0_64 = arith.constant 0 : index
    %47 = vector.load %arg1[%c0_62, %c0_63, %c15, %c0_64] : memref<1x4x16x16xf32, #tpu.memory_space<vmem>>, vector<1x4x1x16xf32>
    %48 = vector.shape_cast %47 : vector<1x4x1x16xf32> to vector<4x16xf32>
    %c0_65 = arith.constant 0 : index
    %c289 = arith.constant 289 : index
    %49 = vector.load %arg5[%c0_65, %c289] : memref<4x342xf32, #tpu.memory_space<vmem>>, vector<4x16xf32>
    tpu.vector_store %arg5[%c0_65, %c289], %48 {strides = array<i32>} : memref<4x342xf32, #tpu.memory_space<vmem>>, vector<4x16xf32>,
    %c0_66 = arith.constant 0 : index
    %c0_67 = arith.constant 0 : index
    %50 = vector.load %arg3[%c0_66, %c0_67] : memref<8x1xf32, #tpu.memory_space<vmem>>, vector<8x1xf32>
    %c0_68 = arith.constant 0 : index
    %c0_69 = arith.constant 0 : index
    %51 = vector.load %arg5[%c0_68, %c0_69] : memref<4x342xf32, #tpu.memory_space<vmem>>, vector<4x288xf32>
    %c0_70 = arith.constant 0 : index
    %c1_71 = arith.constant 1 : index
    %52 = vector.load %arg5[%c0_70, %c1_71] : memref<4x342xf32, #tpu.memory_space<vmem>>, vector<4x288xf32>
    %c0_72 = arith.constant 0 : index
    %c2_73 = arith.constant 2 : index
    %53 = vector.load %arg5[%c0_72, %c2_73] : memref<4x342xf32, #tpu.memory_space<vmem>>, vector<4x288xf32>
    %c0_74 = arith.constant 0 : index
    %c18 = arith.constant 18 : index
    %54 = vector.load %arg5[%c0_74, %c18] : memref<4x342xf32, #tpu.memory_space<vmem>>, vector<4x288xf32>
    %c0_75 = arith.constant 0 : index
    %c19_76 = arith.constant 19 : index
    %55 = vector.load %arg5[%c0_75, %c19_76] : memref<4x342xf32, #tpu.memory_space<vmem>>, vector<4x288xf32>
    %c0_77 = arith.constant 0 : index
    %c20 = arith.constant 20 : index
    %56 = vector.load %arg5[%c0_77, %c20] : memref<4x342xf32, #tpu.memory_space<vmem>>, vector<4x288xf32>
    %c0_78 = arith.constant 0 : index
    %c36 = arith.constant 36 : index
    %57 = vector.load %arg5[%c0_78, %c36] : memref<4x342xf32, #tpu.memory_space<vmem>>, vector<4x288xf32>
    %c0_79 = arith.constant 0 : index
    %c37_80 = arith.constant 37 : index
    %58 = vector.load %arg5[%c0_79, %c37_80] : memref<4x342xf32, #tpu.memory_space<vmem>>, vector<4x288xf32>
    %c0_81 = arith.constant 0 : index
    %c38 = arith.constant 38 : index
    %59 = vector.load %arg5[%c0_81, %c38] : memref<4x342xf32, #tpu.memory_space<vmem>>, vector<4x288xf32>
    %60 = tpu.concatenate %51, %52, %53, %54, %55, %56, %57, %58, %59 in 0 : vector<4x288xf32>, vector<4x288xf32>, vector<4x288xf32>, vector<4x288xf32>, vector<4x288xf32>, vector<4x288xf32>, vector<4x288xf32>, vector<4x288xf32>, vector<4x288xf32> -> vector<36x288xf32>
    %c0_82 = arith.constant 0 : index
    %c0_83 = arith.constant 0 : index
    %61 = vector.load %arg2[%c0_82, %c0_83] : memref<8x36xf32, #tpu.memory_space<vmem>>, vector<8x36xf32>
    %cst_84 = arith.constant dense<0.000000e+00> : vector<8x288xf32>
    %62 = tpu.matmul %61, %60, %cst_84 {dimension_numbers = #tpu.dot_dimension_numbers<[1], [0], [0], [1], [0, 0, 1, 1], [], []>} : vector<8x36xf32>, vector<36x288xf32>, vector<8x288xf32> -> vector<8x288xf32>
    %63 = vector.broadcast %50 : vector<8x1xf32> to vector<8x288xf32>
    %64 = arith.addf %62, %63 : vector<8x288xf32>
    %65 = vector.extract_strided_slice %64 {offsets = [0, 0], sizes = [8, 16], strides = [1, 1]} : vector<8x288xf32> to vector<8x16xf32>
    %66 = vector.extract_strided_slice %64 {offsets = [0, 18], sizes = [8, 16], strides = [1, 1]} : vector<8x288xf32> to vector<8x16xf32>
    %67 = vector.extract_strided_slice %64 {offsets = [0, 36], sizes = [8, 16], strides = [1, 1]} : vector<8x288xf32> to vector<8x16xf32>
    %68 = vector.extract_strided_slice %64 {offsets = [0, 54], sizes = [8, 16], strides = [1, 1]} : vector<8x288xf32> to vector<8x16xf32>
    %69 = vector.extract_strided_slice %64 {offsets = [0, 72], sizes = [8, 16], strides = [1, 1]} : vector<8x288xf32> to vector<8x16xf32>
    %70 = vector.extract_strided_slice %64 {offsets = [0, 90], sizes = [8, 16], strides = [1, 1]} : vector<8x288xf32> to vector<8x16xf32>
    %71 = vector.extract_strided_slice %64 {offsets = [0, 108], sizes = [8, 16], strides = [1, 1]} : vector<8x288xf32> to vector<8x16xf32>
    %72 = vector.extract_strided_slice %64 {offsets = [0, 126], sizes = [8, 16], strides = [1, 1]} : vector<8x288xf32> to vector<8x16xf32>
    %73 = vector.extract_strided_slice %64 {offsets = [0, 144], sizes = [8, 16], strides = [1, 1]} : vector<8x288xf32> to vector<8x16xf32>
    %74 = vector.extract_strided_slice %64 {offsets = [0, 162], sizes = [8, 16], strides = [1, 1]} : vector<8x288xf32> to vector<8x16xf32>
    %75 = vector.extract_strided_slice %64 {offsets = [0, 180], sizes = [8, 16], strides = [1, 1]} : vector<8x288xf32> to vector<8x16xf32>
    %76 = vector.extract_strided_slice %64 {offsets = [0, 198], sizes = [8, 16], strides = [1, 1]} : vector<8x288xf32> to vector<8x16xf32>
    %77 = vector.extract_strided_slice %64 {offsets = [0, 216], sizes = [8, 16], strides = [1, 1]} : vector<8x288xf32> to vector<8x16xf32>
    %78 = vector.extract_strided_slice %64 {offsets = [0, 234], sizes = [8, 16], strides = [1, 1]} : vector<8x288xf32> to vector<8x16xf32>
    %79 = vector.extract_strided_slice %64 {offsets = [0, 252], sizes = [8, 16], strides = [1, 1]} : vector<8x288xf32> to vector<8x16xf32>
    %80 = vector.extract_strided_slice %64 {offsets = [0, 270], sizes = [8, 16], strides = [1, 1]} : vector<8x288xf32> to vector<8x16xf32>
    %81 = tpu.concatenate %65, %66, %67, %68, %69, %70, %71, %72, %73, %74, %75, %76, %77, %78, %79, %80 in 1 : vector<8x16xf32>, vector<8x16xf32>, vector<8x16xf32>, vector<8x16xf32>, vector<8x16xf32>, vector<8x16xf32>, vector<8x16xf32>, vector<8x16xf32>, vector<8x16xf32>, vector<8x16xf32>, vector<8x16xf32>, vector<8x16xf32>, vector<8x16xf32>, vector<8x16xf32>, vector<8x16xf32>, vector<8x16xf32> -> vector<8x256xf32>
    %c0_85 = arith.constant 0 : index
    %c0_86 = arith.constant 0 : index
    %c0_87 = arith.constant 0 : index
    %82 = vector.load %arg4[%c0_85, %c0_86, %c0_87] : memref<1x8x256xf32, #tpu.memory_space<vmem>>, vector<1x8x256xf32>
    %83 = vector.shape_cast %82 : vector<1x8x256xf32> to vector<8x256xf32>
    %84 = vector.shape_cast %81 : vector<8x256xf32> to vector<1x8x256xf32>
    tpu.vector_store %arg4[%c0_85, %c0_86, %c0_87], %84 {strides = array<i32>} : memref<1x8x256xf32, #tpu.memory_space<vmem>>, vector<1x8x256xf32>,
    return
  }
  func.func @transform_0(%arg0: i32) -> (i32, i32, i32, i32) {
    %c0_i32 = arith.constant 0 : i32
    %c0_i32_0 = arith.constant 0 : i32
    %c0_i32_1 = arith.constant 0 : i32
    %c0_i32_2 = arith.constant 0 : i32
    return %arg0, %c0_i32, %c0_i32_0, %c0_i32_1 : i32, i32, i32, i32
  }
  func.func @transform_1(%arg0: i32) -> (i32, i32) {
    %c0_i32 = arith.constant 0 : i32
    %c0_i32_0 = arith.constant 0 : i32
    %c0_i32_1 = arith.constant 0 : i32
    return %c0_i32, %c0_i32_0 : i32, i32
  }
  func.func @transform_2(%arg0: i32) -> (i32, i32) {
    %c0_i32 = arith.constant 0 : i32
    %c0_i32_0 = arith.constant 0 : i32
    %c0_i32_1 = arith.constant 0 : i32
    return %c0_i32, %c0_i32_0 : i32, i32
  }
  func.func @transform_3(%arg0: i32) -> (i32, i32, i32) {
    %c0_i32 = arith.constant 0 : i32
    %c0_i32_0 = arith.constant 0 : i32
    %c0_i32_1 = arith.constant 0 : i32
    return %arg0, %c0_i32, %c0_i32_0 : i32, i32, i32
  }
}

</mosaic_0001>

<llo_original>
// kernel: conv_bias_forward.1
$region0: #{conv_bias_forward.1}
  #allocation0 [shape = 'u32[]', space=smem, size = 0x4, offset = 0x4, fixed_abs, tag = 'smem constant byte address 0x4 - core index']
  #allocation1 [shape = 'u32[144,128]{1,0:T(1,128)}', space=vmem, size = 0x12000, scoped, tag = 'internal scratch']
  #allocation2 [shape = 'f32[4,342]{1,0:T(4,128)}', space=vmem, size = 0x1800, scoped, tag = 'scratch operand']
  %s0 = inlined_call_operand.vmem [shape: f32[2,4,16,16], index: 0, kind: input, shape index: {}]
  %s1 = inlined_call_operand.vmem [shape: f32[8,36], index: 1, kind: input, shape index: {}]
  %s2 = inlined_call_operand.vmem [shape: f32[8,1], index: 2, kind: input, shape index: {}]
  %s3 = inlined_call_operand.vmem [shape: f32[2,8,256], index: 3, kind: output, shape index: {}]
  %s4 = sld [smem:[#allocation0]]
  $region45: #{conv_bias_forward.1} parent=0
    _
  %s6 = ssub.s32 1, %s4
  %s7 = scalar_select 0, %s6, %s4
  loop: start=0, step=1, limit=4
  $region2: #{conv_bias_forward.1} parent=0 // loop_pre_header
    _
  $region3: #{conv_bias_forward.1} parent=0 // loop_header
    %s9 = sphi 0, %s13
    %p10 = scmp.ge.s32.totalorder %s9, 4
    %s19 = sphi 0, %s21
    %s22 = sphi 0, %s19
    %s23 = sphi 0, %s22
    %s39 = sphi 0, %s23
    %s43 = sphi 0, %s43
    %s45 = sphi 0, %s43
    %s46 = sphi 0, %s45
    %s60 = sphi 0, %s46
    %s64 = sphi 0, %s64
    %s66 = sphi 0, %s64
    %s67 = sphi 0, %s66
    %s81 = sphi 0, %s67
    %s87 = sphi 0, %s89
    %s90 = sphi 0, %s87
    %s91 = sphi 0, %s90
    %s107 = sphi 0, %s91
  $region4: #{conv_bias_forward.1} parent=0 // loop_header_branch
    %12 = sbr.rel (%p10) target = $region8
  $region5: #{conv_bias_forward.1} parent=0 // loop_body
    %s14 = ssub.s32 %s9, 1
    %s15 = ssub.s32 %s9, 2
    %s16 = sadd.s32 %s9, 1
    %s17 = ssub.s32 %s9, %s16
    %p18 = scmp.eq.s32.totalorder %s17, 0
    %s20 = sadd.s32 %s19, 1
    %s21 = scalar_select %p18, %s19, %s20
    %p24 = pneg %p18
    %p25 = scmp.eq.s32.totalorder %s9, 1
    %p26 = por %p24, %p25
    %p27 = scmp.ne.s32.totalorder %s19, %s22
    %p28 = scmp.eq.s32.totalorder %s9, 0
    %p29 = por %p27, %p28
    %p30 = scmp.ne.s32.totalorder %s19, %s22
    %p31 = scmp.eq.s32.totalorder %s14, 1
    %p32 = por %p30, %p31
    %p33 = scmp.ne.s32.totalorder %s22, %s23
    %p34 = scmp.eq.s32.totalorder %s14, 0
    %p35 = por %p33, %p34
    %p36 = scmp.ne.s32.totalorder %s22, %s23
    %p37 = scmp.eq.s32.totalorder %s15, 1
    %p38 = por %p36, %p37
    %p40 = scmp.ne.s32.totalorder %s23, %s39
    %p41 = scmp.eq.s32.totalorder %s15, 0
    %p42 = por %p40, %p41
    %s44 = sadd.s32 %s43, 1
    %p47 = scmp.eq.s32.totalorder %s9, 1
    %p48 = scmp.ne.s32.totalorder %s43, %s45
    %p49 = scmp.eq.s32.totalorder %s9, 0
    %p50 = por %p48, %p49
    %p51 = scmp.ne.s32.totalorder %s43, %s45
    %p52 = scmp.eq.s32.totalorder %s14, 1
    %p53 = por %p51, %p52
    %p54 = scmp.ne.s32.totalorder %s45, %s46
    %p55 = scmp.eq.s32.totalorder %s14, 0
    %p56 = por %p54, %p55
    %p57 = scmp.ne.s32.totalorder %s45, %s46
    %p58 = scmp.eq.s32.totalorder %s15, 1
    %p59 = por %p57, %p58
    %p61 = scmp.ne.s32.totalorder %s46, %s60
    %p62 = scmp.eq.s32.totalorder %s15, 0
    %p63 = por %p61, %p62
    %s65 = sadd.s32 %s64, 1
    %p68 = scmp.eq.s32.totalorder %s9, 1
    %p69 = scmp.ne.s32.totalorder %s64, %s66
    %p70 = scmp.eq.s32.totalorder %s9, 0
    %p71 = por %p69, %p70
    %p72 = scmp.ne.s32.totalorder %s64, %s66
    %p73 = scmp.eq.s32.totalorder %s14, 1
    %p74 = por %p72, %p73
    %p75 = scmp.ne.s32.totalorder %s66, %s67
    %p76 = scmp.eq.s32.totalorder %s14, 0
    %p77 = por %p75, %p76
    %p78 = scmp.ne.s32.totalorder %s66, %s67
    %p79 = scmp.eq.s32.totalorder %s15, 1
    %p80 = por %p78, %p79
    %p82 = scmp.ne.s32.totalorder %s67, %s81
    %p83 = scmp.eq.s32.totalorder %s15, 0
    %p84 = por %p82, %p83
    %s85 = ssub.s32 %s9, %s16
    %p86 = scmp.eq.s32.totalorder %s85, 0
    %s88 = sadd.s32 %s87, 1
    %s89 = scalar_select %p86, %s87, %s88
    %p92 = pneg %p86
    %p93 = scmp.eq.s32.totalorder %s9, 1
    %p94 = por %p92, %p93
    %p95 = scmp.ne.s32.totalorder %s87, %s90
    %p96 = scmp.eq.s32.totalorder %s9, 0
    %p97 = por %p95, %p96
    %p98 = scmp.ne.s32.totalorder %s87, %s90
    %p99 = scmp.eq.s32.totalorder %s14, 1
    %p100 = por %p98, %p99
    %p101 = scmp.ne.s32.totalorder %s90, %s91
    %p102 = scmp.eq.s32.totalorder %s14, 0
    %p103 = por %p101, %p102
    %p104 = scmp.ne.s32.totalorder %s90, %s91
    %p105 = scmp.eq.s32.totalorder %s15, 1
    %p106 = por %p104, %p105
    %p108 = scmp.ne.s32.totalorder %s91, %s107
    %p109 = scmp.eq.s32.totalorder %s15, 0
    %p110 = por %p108, %p109
    %p111 = scmp.le.s32.totalorder 1, %s9
    %p112 = scmp.lt.s32.totalorder %s9, 3
    %p113 = pnand %p111, %p112
    %p114 = pneg %p113
    // Predicated region
    $region9: #{conv_bias_forward.1} parent=5 // pred_check
      _
    $region10: #{conv_bias_forward.1} parent=5 // pred_check_branch
      %116 = sbr.rel (%p113) target = $region12
    $region11: #{conv_bias_forward.1} parent=5 // pred_region
      %s117 = ssub.s32 %s9, 1
      // Predicated region
      $region13: #{conv_bias_forward.1} parent=11 // pred_check
        %p118 = pneg %p56
      $region14: #{conv_bias_forward.1} parent=11 // pred_check_branch
        %120 = sbr.rel (%p118) target = $region16
      $region15: #{conv_bias_forward.1} parent=11 // pred_region
        _
      $region16: #{conv_bias_forward.1} parent=11 // pred_fallthru
        _
      // Predicated region
      $region17: #{conv_bias_forward.1} parent=11 // pred_check
        %p121 = pneg %p77
      $region18: #{conv_bias_forward.1} parent=11 // pred_check_branch
        %123 = sbr.rel (%p121) target = $region20
      $region19: #{conv_bias_forward.1} parent=11 // pred_region
        _
      $region20: #{conv_bias_forward.1} parent=11 // pred_fallthru
        _
    $region12: #{conv_bias_forward.1} parent=5 // pred_fallthru
      _
    %p124 = scmp.lt.s32.totalorder %s9, 2
    // Predicated region
    $region21: #{conv_bias_forward.1} parent=5 // pred_check
      %p125 = pneg %p124
    $region22: #{conv_bias_forward.1} parent=5 // pred_check_branch
      %127 = sbr.rel (%p125) target = $region24
    $region23: #{conv_bias_forward.1} parent=5 // pred_region
      // Predicated region
      $region25: #{conv_bias_forward.1} parent=23 // pred_check
        %p128 = pneg %p29
      $region26: #{conv_bias_forward.1} parent=23 // pred_check_branch
        %130 = sbr.rel (%p128) target = $region28
      $region27: #{conv_bias_forward.1} parent=23 // pred_region
        %p131 = scmp.lt.s32.totalorder %s9, 1
        %s132 = scalar_select %p131, %s9, 1
        %s133 = smul.addr %s132, 8
        %s134 = smul.addr %s133, 8
        %s135 = scalar_lea.vmem %s0, %s134
      $region28: #{conv_bias_forward.1} parent=23 // pred_fallthru
        _
    $region24: #{conv_bias_forward.1} parent=5 // pred_fallthru
      _
    %p136 = scmp.le.s32.totalorder 1, %s9
    %p137 = scmp.lt.s32.totalorder %s9, 3
    %p138 = pnand %p136, %p137
    %p139 = pneg %p138
    // Predicated region
    $region29: #{conv_bias_forward.1} parent=5 // pred_check
      _
    $region30: #{conv_bias_forward.1} parent=5 // pred_check_branch
      %141 = sbr.rel (%p138) target = $region32
    $region31: #{conv_bias_forward.1} parent=5 // pred_region
      %s142 = ssub.s32 %s9, 1
      %p143 = scmp.lt.s32.totalorder %s14, 1
      %s144 = scalar_select %p143, %s14, 1
      %s145 = smul.addr %s144, 8
      %s146 = smul.addr %s145, 8
      %s147 = scalar_lea.vmem %s0, %s146
      %p148 = pneg %p35
      %p149 = pneg %p32
      %p150 = pneg %p56
      %p151 = pneg %p53
      %p152 = pneg %p77
      %p153 = pneg %p74
      %p154 = pneg %p103
      %p155 = pneg %p100
      %p156 = scmp.lt.s32.totalorder %s14, 1
      %s157 = scalar_select %p156, %s14, 1
      %s158 = smul.addr %s157, 2
      %s159 = smul.addr %s158, 8
      %s160 = scalar_lea.vmem %s3, %s159
      %p161 = scmp.lt.s32.totalorder %s14, 1
      %s162 = scalar_select %p161, %s14, 1
      %s163 = smul.addr %s162, 8
      %s164 = smul.addr %s163, 8
      %s165 = scalar_lea.vmem %s0, %s164
      %p166 = scmp.lt.s32.totalorder %s14, 1
      %s167 = scalar_select %p166, %s14, 1
      %s168 = smul.addr %s167, 2
      %s169 = smul.addr %s168, 8
      %s170 = scalar_lea.vmem %s3, %s169
      %171 = vst [vmem:[#allocation2] sm:$0xff] 0.0
      %vm172 = vcmask 699392
      %173 = vst.msk [vmem:[#allocation2 + $0x8] sm:$0xf] %vm172, 0.0
      %v174 = vld [vmem:[%s165] sm:$0x1]
      %v175 = vld [vmem:[%s165 + $0x10] sm:$0x1]
      %v176 = vld [vmem:[%s165 + $0x20] sm:$0x1]
      %v177 = vld [vmem:[%s165 + $0x30] sm:$0x1]
      %v182 = vrot.slane %v175, 7
      %vm183 = vcmask 1041409
      %v184 = vsel %vm183, %v182, %v174
      %vm185 = vcmask 1045509
      %v186 = vsel %vm185, %v182, %v184
      %v187 = vrot.slane %v176, 6
      %vm188 = vcmask 1042434
      %v189 = vsel %vm188, %v187, %v186
      %vm190 = vcmask 1046534
      %v191 = vsel %vm190, %v187, %v189
      %v192 = vrot.slane %v177, 5
      %vm193 = vcmask 1043459
      %v194 = vsel %vm193, %v192, %v191
      %vm195 = vcmask 1047559
      %v196 = vsel %vm195, %v192, %v194
      %197 = vrot.lane.b32.xlu0 %v196, 19
      %v198 = vpop.permute.xlu0 %197
      %vm200 = vcmask 281752
      %201 = vst.msk [vmem:[#allocation2] sm:$0xf] %vm200, %v198
      %v202 = vld [vmem:[%s165 + $0x1] sm:$0x1]
      %v203 = vld [vmem:[%s165 + $0x11] sm:$0x1]
      %v204 = vld [vmem:[%s165 + $0x21] sm:$0x1]
      %v205 = vld [vmem:[%s165 + $0x31] sm:$0x1]
      %v210 = vrot.slane %v203, 7
      %v211 = vsel %vm183, %v210, %v202
      %v212 = vsel %vm185, %v210, %v211
      %v213 = vrot.slane %v204, 6
      %v214 = vsel %vm188, %v213, %v212
      %v215 = vsel %vm190, %v213, %v214
      %v216 = vrot.slane %v205, 5
      %v217 = vsel %vm193, %v216, %v215
      %v218 = vsel %vm195, %v216, %v217
      %219 = vrot.lane.b32.xlu0 %v218, 37
      %v220 = vpop.permute.xlu0 %219
      %vm222 = vcmask 429352
      %223 = vst.msk [vmem:[#allocation2] sm:$0xf] %vm222, %v220
      %v224 = vld [vmem:[%s165 + $0x2] sm:$0x1]
      %v225 = vld [vmem:[%s165 + $0x12] sm:$0x1]
      %v226 = vld [vmem:[%s165 + $0x22] sm:$0x1]
      %v227 = vld [vmem:[%s165 + $0x32] sm:$0x1]
      %v232 = vrot.slane %v225, 7
      %v233 = vsel %vm183, %v232, %v224
      %v234 = vsel %vm185, %v232, %v233
      %v235 = vrot.slane %v226, 6
      %v236 = vsel %vm188, %v235, %v234
      %v237 = vsel %vm190, %v235, %v236
      %v238 = vrot.slane %v227, 5
      %v239 = vsel %vm193, %v238, %v237
      %v240 = vsel %vm195, %v238, %v239
      %241 = vrot.lane.b32.xlu0 %v240, 55
      %v242 = vpop.permute.xlu0 %241
      %vm244 = vcmask 576952
      %245 = vst.msk [vmem:[#allocation2] sm:$0xf] %vm244, %v242
      %v246 = vld [vmem:[%s165 + $0x3] sm:$0x1]
      %v247 = vld [vmem:[%s165 + $0x13] sm:$0x1]
      %v248 = vld [vmem:[%s165 + $0x23] sm:$0x1]
      %v249 = vld [vmem:[%s165 + $0x33] sm:$0x1]
      %v254 = vrot.slane %v247, 7
      %v255 = vsel %vm183, %v254, %v246
      %v256 = vsel %vm185, %v254, %v255
      %v257 = vrot.slane %v248, 6
      %v258 = vsel %vm188, %v257, %v256
      %v259 = vsel %vm190, %v257, %v258
      %v260 = vrot.slane %v249, 5
      %v261 = vsel %vm193, %v260, %v259
      %v262 = vsel %vm195, %v260, %v261
      %263 = vrot.lane.b32.xlu0 %v262, 73
      %v264 = vpop.permute.xlu0 %263
      %vm266 = vcmask 724552
      %267 = vst.msk [vmem:[#allocation2] sm:$0xf] %vm266, %v264
      %v268 = vld [vmem:[%s165 + $0x4] sm:$0x1]
      %v269 = vld [vmem:[%s165 + $0x14] sm:$0x1]
      %v270 = vld [vmem:[%s165 + $0x24] sm:$0x1]
      %v271 = vld [vmem:[%s165 + $0x34] sm:$0x1]
      %v276 = vrot.slane %v269, 7
      %v277 = vsel %vm183, %v276, %v268
      %v278 = vsel %vm185, %v276, %v277
      %v279 = vrot.slane %v270, 6
      %v280 = vsel %vm188, %v279, %v278
      %v281 = vsel %vm190, %v279, %v280
      %v282 = vrot.slane %v271, 5
      %v283 = vsel %vm193, %v282, %v281
      %v284 = vsel %vm195, %v282, %v283
      %285 = vrot.lane.b32.xlu0 %v284, 91
      %v286 = vpop.permute.xlu0 %285
      %vm288 = vcmask 872152
      %289 = vst.msk [vmem:[#allocation2] sm:$0xf] %vm288, %v286
      %v290 = vld [vmem:[%s165 + $0x5] sm:$0x1]
      %v291 = vld [vmem:[%s165 + $0x15] sm:$0x1]
      %v292 = vld [vmem:[%s165 + $0x25] sm:$0x1]
      %v293 = vld [vmem:[%s165 + $0x35] sm:$0x1]
      %v298 = vrot.slane %v291, 7
      %v299 = vsel %vm183, %v298, %v290
      %v300 = vsel %vm185, %v298, %v299
      %v301 = vrot.slane %v292, 6
      %v302 = vsel %vm188, %v301, %v300
      %v303 = vsel %vm190, %v301, %v302
      %v304 = vrot.slane %v293, 5
      %v305 = vsel %vm193, %v304, %v303
      %v306 = vsel %vm195, %v304, %v305
      %307 = vrot.lane.b32.xlu0 %v306, 109
      %v308 = vpop.permute.xlu0 %307
      %vm310 = vcmask 1019752
      %311 = vst.msk [vmem:[#allocation2] sm:$0xf] %vm310, %v308
      %v312 = vld [vmem:[%s165 + $0x6] sm:$0x1]
      %v313 = vld [vmem:[%s165 + $0x16] sm:$0x1]
      %v314 = vld [vmem:[%s165 + $0x26] sm:$0x1]
      %v315 = vld [vmem:[%s165 + $0x36] sm:$0x1]
      %v320 = vrot.slane %v313, 7
      %v321 = vsel %vm183, %v320, %v312
      %v322 = vsel %vm185, %v320, %v321
      %v323 = vrot.slane %v314, 6
      %v324 = vsel %vm188, %v323, %v322
      %v325 = vsel %vm190, %v323, %v324
      %v326 = vrot.slane %v315, 5
      %v327 = vsel %vm193, %v326, %v325
      %v328 = vsel %vm195, %v326, %v327
      %329 = vrot.lane.b32.xlu0 %v328, 127
      %v330 = vpop.permute.xlu0 %329
      %v331 = vrot.slane %v330, 4
      %vm332 = vcmask 1039360
      %v333 = vsel %vm332, %v331, %v330
      %vm335 = vcmask 1044472
      %vm336 = vcmask 121860
      %vm337 = vmor %vm336, %vm335
      %338 = vst.msk [vmem:[#allocation2] sm:$0xff] %vm337, %v333
      %v339 = vld [vmem:[%s165 + $0x7] sm:$0x1]
      %v340 = vld [vmem:[%s165 + $0x17] sm:$0x1]
      %v341 = vld [vmem:[%s165 + $0x27] sm:$0x1]
      %v342 = vld [vmem:[%s165 + $0x37] sm:$0x1]
      %v347 = vrot.slane %v340, 7
      %v348 = vsel %vm183, %v347, %v339
      %v349 = vsel %vm185, %v347, %v348
      %v350 = vrot.slane %v341, 6
      %v351 = vsel %vm188, %v350, %v349
      %v352 = vsel %vm190, %v350, %v351
      %v353 = vrot.slane %v342, 5
      %v354 = vsel %vm193, %v353, %v352
      %v355 = vsel %vm195, %v353, %v354
      %356 = vrot.lane.b32.xlu0 %v355, 17
      %v357 = vpop.permute.xlu0 %356
      %vm359 = vcmask 265352
      %360 = vst.msk [vmem:[#allocation2 + $0x4] sm:$0xf] %vm359, %v357
      %v361 = vld [vmem:[%s165 + $0x8] sm:$0x1]
      %v362 = vld [vmem:[%s165 + $0x18] sm:$0x1]
      %v363 = vld [vmem:[%s165 + $0x28] sm:$0x1]
      %v364 = vld [vmem:[%s165 + $0x38] sm:$0x1]
      %v369 = vrot.slane %v362, 7
      %v370 = vsel %vm183, %v369, %v361
      %v371 = vsel %vm185, %v369, %v370
      %v372 = vrot.slane %v363, 6
      %v373 = vsel %vm188, %v372, %v371
      %v374 = vsel %vm190, %v372, %v373
      %v375 = vrot.slane %v364, 5
      %v376 = vsel %vm193, %v375, %v374
      %v377 = vsel %vm195, %v375, %v376
      %378 = vrot.lane.b32.xlu0 %v377, 35
      %v379 = vpop.permute.xlu0 %378
      %vm381 = vcmask 412952
      %382 = vst.msk [vmem:[#allocation2 + $0x4] sm:$0xf] %vm381, %v379
      %v383 = vld [vmem:[%s165 + $0x9] sm:$0x1]
      %v384 = vld [vmem:[%s165 + $0x19] sm:$0x1]
      %v385 = vld [vmem:[%s165 + $0x29] sm:$0x1]
      %v386 = vld [vmem:[%s165 + $0x39] sm:$0x1]
      %v391 = vrot.slane %v384, 7
      %v392 = vsel %vm183, %v391, %v383
      %v393 = vsel %vm185, %v391, %v392
      %v394 = vrot.slane %v385, 6
      %v395 = vsel %vm188, %v394, %v393
      %v396 = vsel %vm190, %v394, %v395
      %v397 = vrot.slane %v386, 5
      %v398 = vsel %vm193, %v397, %v396
      %v399 = vsel %vm195, %v397, %v398
      %400 = vrot.lane.b32.xlu0 %v399, 53
      %v401 = vpop.permute.xlu0 %400
      %vm403 = vcmask 560552
      %404 = vst.msk [vmem:[#allocation2 + $0x4] sm:$0xf] %vm403, %v401
      %v405 = vld [vmem:[%s165 + $0xa] sm:$0x1]
      %v406 = vld [vmem:[%s165 + $0x1a] sm:$0x1]
      %v407 = vld [vmem:[%s165 + $0x2a] sm:$0x1]
      %v408 = vld [vmem:[%s165 + $0x3a] sm:$0x1]
      %v413 = vrot.slane %v406, 7
      %v414 = vsel %vm183, %v413, %v405
      %v415 = vsel %vm185, %v413, %v414
      %v416 = vrot.slane %v407, 6
      %v417 = vsel %vm188, %v416, %v415
      %v418 = vsel %vm190, %v416, %v417
      %v419 = vrot.slane %v408, 5
      %v420 = vsel %vm193, %v419, %v418
      %v421 = vsel %vm195, %v419, %v420
      %422 = vrot.lane.b32.xlu0 %v421, 71
      %v423 = vpop.permute.xlu0 %422
      %vm425 = vcmask 708152
      %426 = vst.msk [vmem:[#allocation2 + $0x4] sm:$0xf] %vm425, %v423
      %v427 = vld [vmem:[%s165 + $0xb] sm:$0x1]
      %v428 = vld [vmem:[%s165 + $0x1b] sm:$0x1]
      %v429 = vld [vmem:[%s165 + $0x2b] sm:$0x1]
      %v430 = vld [vmem:[%s165 + $0x3b] sm:$0x1]
      %v435 = vrot.slane %v428, 7
      %v436 = vsel %vm183, %v435, %v427
      %v437 = vsel %vm185, %v435, %v436
      %v438 = vrot.slane %v429, 6
      %v439 = vsel %vm188, %v438, %v437
      %v440 = vsel %vm190, %v438, %v439
      %v441 = vrot.slane %v430, 5
      %v442 = vsel %vm193, %v441, %v440
      %v443 = vsel %vm195, %v441, %v442
      %444 = vrot.lane.b32.xlu0 %v443, 89
      %v445 = vpop.permute.xlu0 %444
      %vm447 = vcmask 855752
      %448 = vst.msk [vmem:[#allocation2 + $0x4] sm:$0xf] %vm447, %v445
      %v449 = vld [vmem:[%s165 + $0xc] sm:$0x1]
      %v450 = vld [vmem:[%s165 + $0x1c] sm:$0x1]
      %v451 = vld [vmem:[%s165 + $0x2c] sm:$0x1]
      %v452 = vld [vmem:[%s165 + $0x3c] sm:$0x1]
      %v457 = vrot.slane %v450, 7
      %v458 = vsel %vm183, %v457, %v449
      %v459 = vsel %vm185, %v457, %v458
      %v460 = vrot.slane %v451, 6
      %v461 = vsel %vm188, %v460, %v459
      %v462 = vsel %vm190, %v460, %v461
      %v463 = vrot.slane %v452, 5
      %v464 = vsel %vm193, %v463, %v462
      %v465 = vsel %vm195, %v463, %v464
      %466 = vrot.lane.b32.xlu0 %v465, 107
      %v467 = vpop.permute.xlu0 %466
      %vm469 = vcmask 1003352
      %470 = vst.msk [vmem:[#allocation2 + $0x4] sm:$0xf] %vm469, %v467
      %v471 = vld [vmem:[%s165 + $0xd] sm:$0x1]
      %v472 = vld [vmem:[%s165 + $0x1d] sm:$0x1]
      %v473 = vld [vmem:[%s165 + $0x2d] sm:$0x1]
      %v474 = vld [vmem:[%s165 + $0x3d] sm:$0x1]
      %v479 = vrot.slane %v472, 7
      %v480 = vsel %vm183, %v479, %v471
      %v481 = vsel %vm185, %v479, %v480
      %v482 = vrot.slane %v473, 6
      %v483 = vsel %vm188, %v482, %v481
      %v484 = vsel %vm190, %v482, %v483
      %v485 = vrot.slane %v474, 5
      %v486 = vsel %vm193, %v485, %v484
      %v487 = vsel %vm195, %v485, %v486
      %488 = vrot.lane.b32.xlu0 %v487, 125
      %v489 = vpop.permute.xlu0 %488
      %v490 = vrot.slane %v489, 4
      %vm491 = vcmask 1022976
      %v492 = vsel %vm491, %v490, %v489
      %vm494 = vcmask 1044456
      %vm495 = vcmask 105476
      %vm496 = vmor %vm495, %vm494
      %497 = vst.msk [vmem:[#allocation2 + $0x4] sm:$0xff] %vm496, %v492
      %v498 = vld [vmem:[%s165 + $0xe] sm:$0x1]
      %v499 = vld [vmem:[%s165 + $0x1e] sm:$0x1]
      %v500 = vld [vmem:[%s165 + $0x2e] sm:$0x1]
      %v501 = vld [vmem:[%s165 + $0x3e] sm:$0x1]
      %v506 = vrot.slane %v499, 7
      %v507 = vsel %vm183, %v506, %v498
      %v508 = vsel %vm185, %v506, %v507
      %v509 = vrot.slane %v500, 6
      %v510 = vsel %vm188, %v509, %v508
      %v511 = vsel %vm190, %v509, %v510
      %v512 = vrot.slane %v501, 5
      %v513 = vsel %vm193, %v512, %v511
      %v514 = vsel %vm195, %v512, %v513
      %515 = vrot.lane.b32.xlu0 %v514, 15
      %v516 = vpop.permute.xlu0 %515
      %vm518 = vcmask 248952
      %519 = vst.msk [vmem:[#allocation2 + $0x8] sm:$0xf] %vm518, %v516
      %v520 = vld [vmem:[%s165 + $0xf] sm:$0x1]
      %v521 = vld [vmem:[%s165 + $0x1f] sm:$0x1]
      %v522 = vld [vmem:[%s165 + $0x2f] sm:$0x1]
      %v523 = vld [vmem:[%s165 + $0x3f] sm:$0x1]
      %v528 = vrot.slane %v521, 7
      %v529 = vsel %vm183, %v528, %v520
      %v530 = vsel %vm185, %v528, %v529
      %v531 = vrot.slane %v522, 6
      %v532 = vsel %vm188, %v531, %v530
      %v533 = vsel %vm190, %v531, %v532
      %v534 = vrot.slane %v523, 5
      %v535 = vsel %vm193, %v534, %v533
      %v536 = vsel %vm195, %v534, %v535
      %537 = vrot.lane.b32.xlu0 %v536, 33
      %v538 = vpop.permute.xlu0 %537
      %vm540 = vcmask 396552
      %541 = vst.msk [vmem:[#allocation2 + $0x8] sm:$0xf] %vm540, %v538
      %v542 = vld [vmem:[%s2] sm:$0xff]
      %v543 = vld [vmem:[#allocation2] sm:$0xff]
      %v544 = vld [vmem:[#allocation2 + $0x8] sm:$0xf]
      %v547 = vcombine.high %v543, %v543
      %v549 = vcombine.low %v543, %v543
      %v550 = vcombine.low %v544, %v544
      %551 = vrot.lane.b32.xlu0 %v549, 127
      %v552 = vpop.permute.xlu0 %551
      %553 = vrot.lane.b32.xlu0 %v543, 127
      %v554 = vpop.permute.xlu0 %553
      %555 = vrot.lane.b32.xlu0 %v550, 127
      %v556 = vpop.permute.xlu0 %555
      %v557 = vsel %vm332, %v552, %v554
      %v558 = vsel %vm332, %v554, %v556
      %562 = vrot.lane.b32.xlu0 %v543, 126
      %v563 = vpop.permute.xlu0 %562
      %564 = vrot.lane.b32.xlu0 %v547, 126
      %v565 = vpop.permute.xlu0 %564
      %566 = vrot.lane.b32.xlu0 %v544, 126
      %v567 = vpop.permute.xlu0 %566
      %vm568 = vcmask 1031168
      %v569 = vsel %vm568, %v563, %v565
      %v570 = vsel %vm568, %v565, %v567
      %574 = vrot.lane.b32.xlu0 %v549, 110
      %v575 = vpop.permute.xlu0 %574
      %576 = vrot.lane.b32.xlu0 %v543, 110
      %v577 = vpop.permute.xlu0 %576
      %578 = vrot.lane.b32.xlu0 %v550, 110
      %v579 = vpop.permute.xlu0 %578
      %vm580 = vcmask 900096
      %v581 = vsel %vm580, %v575, %v577
      %v582 = vsel %vm580, %v577, %v579
      %586 = vrot.lane.b32.xlu0 %v543, 109
      %v587 = vpop.permute.xlu0 %586
      %588 = vrot.lane.b32.xlu0 %v547, 109
      %v589 = vpop.permute.xlu0 %588
      %590 = vrot.lane.b32.xlu0 %v544, 109
      %v591 = vpop.permute.xlu0 %590
      %vm592 = vcmask 891904
      %v593 = vsel %vm592, %v587, %v589
      %v594 = vsel %vm592, %v589, %v591
      %598 = vrot.lane.b32.xlu0 %v549, 108
      %v599 = vpop.permute.xlu0 %598
      %600 = vrot.lane.b32.xlu0 %v543, 108
      %v601 = vpop.permute.xlu0 %600
      %602 = vrot.lane.b32.xlu0 %v550, 108
      %v603 = vpop.permute.xlu0 %602
      %vm604 = vcmask 883712
      %v605 = vsel %vm604, %v599, %v601
      %v606 = vsel %vm604, %v601, %v603
      %610 = vrot.lane.b32.xlu0 %v543, 92
      %v611 = vpop.permute.xlu0 %610
      %612 = vrot.lane.b32.xlu0 %v547, 92
      %v613 = vpop.permute.xlu0 %612
      %614 = vrot.lane.b32.xlu0 %v544, 92
      %v615 = vpop.permute.xlu0 %614
      %vm616 = vcmask 752640
      %v617 = vsel %vm616, %v611, %v613
      %v618 = vsel %vm616, %v613, %v615
      %622 = vrot.lane.b32.xlu0 %v549, 91
      %v623 = vpop.permute.xlu0 %622
      %624 = vrot.lane.b32.xlu0 %v543, 91
      %v625 = vpop.permute.xlu0 %624
      %626 = vrot.lane.b32.xlu0 %v550, 91
      %v627 = vpop.permute.xlu0 %626
      %vm628 = vcmask 744448
      %v629 = vsel %vm628, %v623, %v625
      %v630 = vsel %vm628, %v625, %v627
      %634 = vrot.lane.b32.xlu0 %v543, 90
      %v635 = vpop.permute.xlu0 %634
      %636 = vrot.lane.b32.xlu0 %v547, 90
      %v637 = vpop.permute.xlu0 %636
      %638 = vrot.lane.b32.xlu0 %v544, 90
      %v639 = vpop.permute.xlu0 %638
      %vm640 = vcmask 736256
      %v641 = vsel %vm640, %v635, %v637
      %v642 = vsel %vm640, %v637, %v639
      %vm643 = vcmask 1043456
      %v644 = vsel %vm643, %v543, %v557
      %v645 = vsel %vm643, %v547, %v558
      %v646 = vsel %vm643, %v544, %v556
      %v647 = vsel %vm643, %v569, %v581
      %v648 = vsel %vm643, %v570, %v582
      %v649 = vsel %vm643, %v567, %v579
      %v650 = vsel %vm643, %v593, %v605
      %v651 = vsel %vm643, %v594, %v606
      %v652 = vsel %vm643, %v591, %v603
      %v653 = vsel %vm643, %v617, %v629
      %v654 = vsel %vm643, %v618, %v630
      %v655 = vsel %vm643, %v615, %v627
      %v656 = vld [vmem:[%s1] sm:$0xff]
      %658 = vset.pattern.permute.xlu0 0
      %659 = vperm.xlu0 %658, %v542
      %v660 = vpop.permute.xlu0 %659
      %vm662 = vcmask 293888
      %v664 = vsel %vm662, %v656, 0
      %v666 = vsel %vm643, %v641, 0
      %v668 = vsel %vm643, %v642, 0
      %v670 = vsel %vm643, %v639, 0
      %672 = vmatprep.subr.mxu0 0.0
      %673 = vmatpush1.msra.mxu0 0.0
      %674 = vmatprep.subr.mxu0 0.0
      %675 = vmatpush1.msra.mxu0 0.0
      %676 = vmatprep.subr.mxu0 0.0
      %677 = vmatpush1.msra.mxu0 0.0
      %678 = vmatprep.subr.mxu0 0.0
      %679 = vmatpush1.msra.mxu0 0.0
      %680 = vmatprep.subr.mxu0 0.0
      %681 = vmatpush1.msra.mxu0 0.0
      %682 = vmatprep.subr.mxu0 0.0
      %683 = vmatpush1.msra.mxu0 0.0
      %684 = vmatprep.subr.mxu0 0.0
      %685 = vmatpush1.msra.mxu0 0.0
      %686 = vmatprep.subr.mxu0 0.0
      %687 = vmatpush1.msra.mxu0 0.0
      %688 = vmatprep.subr.mxu0 0.0
      %689 = vmatpush1.msra.mxu0 0.0
      %690 = vmatprep.subr.mxu0 0.0
      %691 = vmatpush1.msra.mxu0 0.0
      %692 = vmatprep.subr.mxu0 0.0
      %693 = vmatpush1.msra.mxu0 0.0
      %694 = vmatprep.subr.mxu0 %v668
      %695 = vmatpush1.msra.mxu0 %v666
      %696 = vmatprep.subr.mxu0 %v654
      %697 = vmatpush1.msra.mxu0 %v653
      %698 = vmatprep.subr.mxu0 %v651
      %699 = vmatpush1.msra.mxu0 %v650
      %700 = vmatprep.subr.mxu0 %v648
      %701 = vmatpush1.msra.mxu0 %v647
      %702 = vmatprep.subr.mxu0 %v645
      %703 = vmatpush1.msra.mxu0 %v644
      %704 = vmatprep.subr.mxu0 0.0
      %705 = vmatpush2.msra.mxu0 0.0
      %706 = vmatprep.subr.mxu0 0.0
      %707 = vmatpush2.msra.mxu0 0.0
      %708 = vmatprep.subr.mxu0 0.0
      %709 = vmatpush2.msra.mxu0 0.0
      %710 = vmatprep.subr.mxu0 0.0
      %711 = vmatpush2.msra.mxu0 0.0
      %712 = vmatprep.subr.mxu0 0.0
      %713 = vmatpush2.msra.mxu0 0.0
      %714 = vmatprep.subr.mxu0 0.0
      %715 = vmatpush2.msra.mxu0 0.0
      %716 = vmatprep.subr.mxu0 0.0
      %717 = vmatpush2.msra.mxu0 0.0
      %718 = vmatprep.subr.mxu0 0.0
      %719 = vmatpush2.msra.mxu0 0.0
      %720 = vmatprep.subr.mxu0 0.0
      %721 = vmatpush2.msra.mxu0 0.0
      %722 = vmatprep.subr.mxu0 0.0
      %723 = vmatpush2.msra.mxu0 0.0
      %724 = vmatprep.subr.mxu0 0.0
      %725 = vmatpush2.msra.mxu0 0.0
      %726 = vmatprep.subr.mxu0 0.0
      %727 = vmatpush2.msra.mxu0 0.0
      %728 = vmatprep.subr.mxu0 0.0
      %729 = vmatpush2.msra.mxu0 0.0
      %730 = vmatprep.subr.mxu0 0.0
      %731 = vmatpush2.msra.mxu0 0.0
      %732 = vmatprep.subr.mxu0 0.0
      %733 = vmatpush2.msra.mxu0 0.0
      %734 = vmatprep.subr.mxu0 0.0
      %735 = vmatpush2.msra.mxu0 0.0
      %736 = vmatprep.mubr.f32.mxu0 0.0
      %737 = vmatmul.mubr.f32.gmra.mxu0 %v664
      %v738 = vpop.f32.mrf.mxu0
      %v739 = vadd.f32 %v660, %v738
      %v740 = vpop.f32.mrf.mxu0
      %v741 = vadd.f32 %v660, %v740
      %742 = vdwg.mxu0
      %743 = vmatprep.subr.mxu0 0.0
      %744 = vmatpush1.msra.mxu0 0.0
      %745 = vmatprep.subr.mxu0 0.0
      %746 = vmatpush1.msra.mxu0 0.0
      %747 = vmatprep.subr.mxu0 0.0
      %748 = vmatpush1.msra.mxu0 0.0
      %749 = vmatprep.subr.mxu0 0.0
      %750 = vmatpush1.msra.mxu0 0.0
      %751 = vmatprep.subr.mxu0 0.0
      %752 = vmatpush1.msra.mxu0 0.0
      %753 = vmatprep.subr.mxu0 0.0
      %754 = vmatpush1.msra.mxu0 0.0
      %755 = vmatprep.subr.mxu0 0.0
      %756 = vmatpush1.msra.mxu0 0.0
      %757 = vmatprep.subr.mxu0 0.0
      %758 = vmatpush1.msra.mxu0 0.0
      %759 = vmatprep.subr.mxu0 0.0
      %760 = vmatpush1.msra.mxu0 0.0
      %761 = vmatprep.subr.mxu0 0.0
      %762 = vmatpush1.msra.mxu0 0.0
      %763 = vmatprep.subr.mxu0 0.0
      %764 = vmatpush1.msra.mxu0 0.0
      %765 = vmatprep.subr.mxu0 0.0
      %766 = vmatpush1.msra.mxu0 %v670
      %767 = vmatprep.subr.mxu0 0.0
      %768 = vmatpush1.msra.mxu0 %v655
      %769 = vmatprep.subr.mxu0 0.0
      %770 = vmatpush1.msra.mxu0 %v652
      %771 = vmatprep.subr.mxu0 0.0
      %772 = vmatpush1.msra.mxu0 %v649
      %773 = vmatprep.subr.mxu0 0.0
      %774 = vmatpush1.msra.mxu0 %v646
      %775 = vmatprep.subr.mxu0 0.0
      %776 = vmatpush2.msra.mxu0 0.0
      %777 = vmatprep.subr.mxu0 0.0
      %778 = vmatpush2.msra.mxu0 0.0
      %779 = vmatprep.subr.mxu0 0.0
      %780 = vmatpush2.msra.mxu0 0.0
      %781 = vmatprep.subr.mxu0 0.0
      %782 = vmatpush2.msra.mxu0 0.0
      %783 = vmatprep.subr.mxu0 0.0
      %784 = vmatpush2.msra.mxu0 0.0
      %785 = vmatprep.subr.mxu0 0.0
      %786 = vmatpush2.msra.mxu0 0.0
      %787 = vmatprep.subr.mxu0 0.0
      %788 = vmatpush2.msra.mxu0 0.0
      %789 = vmatprep.subr.mxu0 0.0
      %790 = vmatpush2.msra.mxu0 0.0
      %791 = vmatprep.subr.mxu0 0.0
      %792 = vmatpush2.msra.mxu0 0.0
      %793 = vmatprep.subr.mxu0 0.0
      %794 = vmatpush2.msra.mxu0 0.0
      %795 = vmatprep.subr.mxu0 0.0
      %796 = vmatpush2.msra.mxu0 0.0
      %797 = vmatprep.subr.mxu0 0.0
      %798 = vmatpush2.msra.mxu0 0.0
      %799 = vmatprep.subr.mxu0 0.0
      %800 = vmatpush2.msra.mxu0 0.0
      %801 = vmatprep.subr.mxu0 0.0
      %802 = vmatpush2.msra.mxu0 0.0
      %803 = vmatprep.subr.mxu0 0.0
      %804 = vmatpush2.msra.mxu0 0.0
      %805 = vmatprep.subr.mxu0 0.0
      %806 = vmatpush2.msra.mxu0 0.0
      %807 = vmatprep.mubr.f32.mxu0 0.0
      %808 = vmatmul.mubr.f32.gmra.mxu0 %v664
      %v809 = vpop.f32.mrf.mxu0
      %v810 = vadd.f32 %v660, %v809
      %v811 = vpop.f32.mrf.mxu0
      %812 = vdwg.mxu0
      %814 = vrot.lane.b32.xlu0 %v739, 126
      %v815 = vpop.permute.xlu0 %814
      %817 = vrot.lane.b32.xlu0 %v739, 124
      %v818 = vpop.permute.xlu0 %817
      %820 = vrot.lane.b32.xlu0 %v739, 122
      %v821 = vpop.permute.xlu0 %820
      %823 = vrot.lane.b32.xlu0 %v739, 120
      %v824 = vpop.permute.xlu0 %823
      %826 = vrot.lane.b32.xlu0 %v739, 118
      %v827 = vpop.permute.xlu0 %826
      %829 = vrot.lane.b32.xlu0 %v739, 116
      %v830 = vpop.permute.xlu0 %829
      %833 = vrot.lane.b32.xlu0 %v739, 114
      %v834 = vpop.permute.xlu0 %833
      %835 = vrot.lane.b32.xlu0 %v741, 114
      %v836 = vpop.permute.xlu0 %835
      %vm837 = vcmask 932864
      %v838 = vsel %vm837, %v834, %v836
      %840 = vrot.lane.b32.xlu0 %v741, 112
      %v841 = vpop.permute.xlu0 %840
      %843 = vrot.lane.b32.xlu0 %v741, 110
      %v844 = vpop.permute.xlu0 %843
      %846 = vrot.lane.b32.xlu0 %v741, 108
      %v847 = vpop.permute.xlu0 %846
      %849 = vrot.lane.b32.xlu0 %v741, 106
      %v850 = vpop.permute.xlu0 %849
      %852 = vrot.lane.b32.xlu0 %v741, 104
      %v853 = vpop.permute.xlu0 %852
      %855 = vrot.lane.b32.xlu0 %v741, 102
      %v856 = vpop.permute.xlu0 %855
      %859 = vrot.lane.b32.xlu0 %v741, 100
      %v860 = vpop.permute.xlu0 %859
      %861 = vrot.lane.b32.xlu0 %v810, 100
      %v862 = vpop.permute.xlu0 %861
      %vm863 = vcmask 818176
      %v864 = vsel %vm863, %v860, %v862
      %866 = vrot.lane.b32.xlu0 %v810, 98
      %v867 = vpop.permute.xlu0 %866
      %vm869 = vcmask 130048
      %v870 = vsel %vm869, %v739, %v815
      %vm871 = vcmask 261120
      %v872 = vsel %vm871, %v870, %v818
      %vm873 = vcmask 392192
      %v874 = vsel %vm873, %v872, %v821
      %vm875 = vcmask 523264
      %v876 = vsel %vm875, %v874, %v824
      %vm877 = vcmask 654336
      %v878 = vsel %vm877, %v876, %v827
      %vm879 = vcmask 785408
      %v880 = vsel %vm879, %v878, %v830
      %vm881 = vcmask 916480
      %v882 = vsel %vm881, %v880, %v838
      %v883 = vsel %vm869, %v841, %v844
      %v884 = vsel %vm871, %v883, %v847
      %v885 = vsel %vm873, %v884, %v850
      %v886 = vsel %vm875, %v885, %v853
      %v887 = vsel %vm877, %v886, %v856
      %v888 = vsel %vm879, %v887, %v864
      %v889 = vsel %vm881, %v888, %v867
      %890 = vst [vmem:[%s170] sm:$0xff] %v882
      %891 = vst [vmem:[%s170 + $0x8] sm:$0xff] %v889
      %p892 = scmp.lt.s32.totalorder %s14, 1
      %s893 = scalar_select %p892, %s14, 1
      %s894 = smul.addr %s893, 2
      %s895 = smul.addr %s894, 8
      %s896 = scalar_lea.vmem %s3, %s895
      // Predicated region
      $region33: #{conv_bias_forward.1} parent=31 // pred_check
        %p897 = pneg %p100
      $region34: #{conv_bias_forward.1} parent=31 // pred_check_branch
        %899 = sbr.rel (%p897) target = $region36
      $region35: #{conv_bias_forward.1} parent=31 // pred_region
        _
      $region36: #{conv_bias_forward.1} parent=31 // pred_fallthru
        _
    $region32: #{conv_bias_forward.1} parent=5 // pred_fallthru
      _
    %p900 = scmp.le.s32.totalorder 2, %s9
    // Predicated region
    $region37: #{conv_bias_forward.1} parent=5 // pred_check
      %p901 = pneg %p900
    $region38: #{conv_bias_forward.1} parent=5 // pred_check_branch
      %903 = sbr.rel (%p901) target = $region40
    $region39: #{conv_bias_forward.1} parent=5 // pred_region
      %s904 = ssub.s32 %s9, 2
      // Predicated region
      $region41: #{conv_bias_forward.1} parent=39 // pred_check
        %p905 = pneg %p106
      $region42: #{conv_bias_forward.1} parent=39 // pred_check_branch
        %907 = sbr.rel (%p905) target = $region44
      $region43: #{conv_bias_forward.1} parent=39 // pred_region
        %p908 = scmp.lt.s32.totalorder %s15, 1
        %s909 = scalar_select %p908, %s15, 1
        %s910 = smul.addr %s909, 2
        %s911 = smul.addr %s910, 8
        %s912 = scalar_lea.vmem %s3, %s911
      $region44: #{conv_bias_forward.1} parent=39 // pred_fallthru
        _
    $region40: #{conv_bias_forward.1} parent=5 // pred_fallthru
      _
  $region6: #{conv_bias_forward.1} parent=0 // loop_footer
    %s13 = sadd.s32 1, %s9
  $region7: #{conv_bias_forward.1} parent=0 // loop_footer_branch
    %8 = sbr.rel target = $region3
  $region8: #{conv_bias_forward.1} parent=0 // loop_exit
    _

</llo_original>
